<compile_context>
chip_gen: v7x
topology: tpu7x:2x2x1
jax: 0.10.0
libtpu: 0.0.40
codegen_flags: <defaults>
</compile_context>

<pallas_src>
import functools

import jax
import jax.numpy as jnp
from jax import lax
from jax.experimental import pallas as pl
from jax.experimental.pallas import tpu as pltpu


def _cdiv(a, b):
    return -(-a // b)


def _round_up(a, b):
    return _cdiv(a, b) * b


def _mlp_kernel(x_ref, w1_ref, b1_ref, w2_ref, b2_ref, o_ref, *, chunk, n_chunks):
    """One (3, TB) batch tile: y^T = W2 @ relu(W1 @ x^T + b1) + b2."""
    w1 = w1_ref[...]   # [32, 3]  (torch layout)
    b1 = b1_ref[...]   # [32, 1]
    w2 = w2_ref[...]   # [3, 32]
    b2 = b2_ref[...]   # [3, 1]

    def body(c, carry):
        j = pl.multiple_of(c * chunk, chunk)
        x = x_ref[:, pl.ds(j, chunk)]                                # [3, chunk]
        # Layer 1 on the MXU: [32, 3] @ [3, chunk] (K=3 is free; MXU is idle).
        h = jnp.dot(w1, x, preferred_element_type=jnp.float32) + b1  # [32, chunk]
        h = jnp.maximum(h, 0.0)                                      # ReLU (VPU)
        # Layer 2 on the MXU: [3, 32] @ [32, chunk] -> lane-dense [3, chunk].
        y = jnp.dot(w2, h, preferred_element_type=jnp.float32) + b2
        o_ref[:, pl.ds(j, chunk)] = y.astype(o_ref.dtype)
        return carry

    lax.fori_loop(0, n_chunks, body, 0, unroll=True)


def bisnis_assistant_forward_t(x_t, w1, b1, w2, b2, *, tb=4096):
    """Feature-major forward: x_t [3, B] -> y_t [3, B] (preferred entry point,
    avoids any wrapper-side transpose passes)."""
    f, batch = x_t.shape
    assert f == 3
    # Big lane tiles amortize per-step pipeline overhead; clamp so tiny batches
    # don't balloon, and so any batch spanning >1 lane tile gets >=2 grid steps
    # (keeps both v7x TensorCores busy via the "parallel" grid axis).
    tb_eff = int(min(tb, _round_up(max(_cdiv(batch, 2), 1), 128)))
    n_tiles = _cdiv(batch, tb_eff)
    b_pad = n_tiles * tb_eff
    if b_pad != batch:
        x_t = jnp.pad(x_t, ((0, 0), (0, b_pad - batch)))  # single fused pad pass

    # Strip-mine chunk that divides the tile (tb_eff is always a multiple of 128).
    chunk = next(c for c in (512, 256, 128) if tb_eff % c == 0)
    kernel = functools.partial(_mlp_kernel, chunk=chunk, n_chunks=tb_eff // chunk)

    out_t = pl.pallas_call(
        kernel,
        out_shape=jax.ShapeDtypeStruct((3, b_pad), jnp.float32),
        grid=(n_tiles,),
        in_specs=[
            pl.BlockSpec((3, tb_eff), lambda i: (0, i)),   # x^T tile (streamed)
            pl.BlockSpec((32, 3), lambda i: (0, 0)),       # W1 (VMEM-resident)
            pl.BlockSpec((32, 1), lambda i: (0, 0)),       # b1 (VMEM-resident)
            pl.BlockSpec((3, 32), lambda i: (0, 0)),       # W2 (VMEM-resident)
            pl.BlockSpec((3, 1), lambda i: (0, 0)),        # b2 (VMEM-resident)
        ],
        out_specs=pl.BlockSpec((3, tb_eff), lambda i: (0, i)),
        compiler_params=pltpu.CompilerParams(
            dimension_semantics=("parallel",),
            vmem_limit_bytes=32 * 1024 * 1024,
        ),
    )(x_t, w1, b1, w2, b2)

    return out_t if b_pad == batch else out_t[:, :batch]


def bisnis_assistant_forward(x, w1, b1, w2, b2, *, tb=4096):
    """Row-major convenience wrapper: x [B, 3] -> [B, 3] (PyTorch convention).

    Adds two transpose passes over the data; prefer bisnis_assistant_forward_t
    with feature-major [3, B] data when the caller controls the layout.
    """
    bsz, f = x.shape
    assert f == 3
    y_t = bisnis_assistant_forward_t(x.T, w1, b1, w2, b2, tb=tb)
    return y_t.T


def init_params(key):
    # nn.Linear shapes: Linear(3, 32) weight [32, 3] bias [32];
    # Linear(32, 3) weight [3, 32] bias [3].  Torch layouts kept; biases stored
    # as column vectors for the feature-major kernel.
    k1, k2, k3, k4 = jax.random.split(key, 4)
    w1 = jax.random.uniform(k1, (32, 3), jnp.float32, -0.5, 0.5)
    b1 = jax.random.uniform(k2, (32,), jnp.float32, -0.5, 0.5)
    w2 = jax.random.uniform(k3, (3, 32), jnp.float32, -0.5, 0.5)
    b2 = jax.random.uniform(k4, (3,), jnp.float32, -0.5, 0.5)
    return w1, b1.reshape(32, 1), w2, b2.reshape(3, 1)


if __name__ == "__main__":
    key = jax.random.PRNGKey(0)
    kx, kp = jax.random.split(key)
    w1, b1, w2, b2 = init_params(kp)

    def ref_fwd(x):
        # Pure-JAX reference with PyTorch semantics.
        return jnp.maximum(x @ w1.T + b1.reshape(1, 32), 0.0) @ w2.T + b2.reshape(1, 3)

    # Small single-tile batch plus a >1-tile batch to exercise the multi-step
    # grid and tail padding / slicing.
    for bsz in (8, 300):
        x = jax.random.normal(jax.random.fold_in(kx, bsz), (bsz, 3), jnp.float32)
        out = jax.block_until_ready(bisnis_assistant_forward(x, w1, b1, w2, b2))
        assert out.shape == (bsz, 3)
        assert jnp.allclose(out, ref_fwd(x), atol=1e-5, rtol=1e-5)

    print("KERNEL_OK")
</pallas_src>

<mosaic_0001>
module attributes {stable_mosaic.version = 11 : i64} {
  func.func @_mlp_kernel(%arg0: i32, %arg1: memref<3x128xf32, #tpu.memory_space<vmem>>, %arg2: memref<32x3xf32, #tpu.memory_space<vmem>>, %arg3: memref<32x1xf32, #tpu.memory_space<vmem>>, %arg4: memref<3x32xf32, #tpu.memory_space<vmem>>, %arg5: memref<3x1xf32, #tpu.memory_space<vmem>>, %arg6: memref<3x128xf32, #tpu.memory_space<vmem>>) attributes {dimension_semantics = [#tpu.dimension_semantics<parallel>], iteration_bounds = array<i64: 1>, scalar_prefetch = 0 : i64, scratch_operands = 0 : i64, tpu.core_type = #tpu.core_type<tc>, window_params = [{transform_indices = @transform_0, window_bounds = array<i64: 3, 128>}, {pipeline_mode = #tpu.pipeline_mode<synchronous>, transform_indices = @transform_1, window_bounds = array<i64: 32, 3>}, {pipeline_mode = #tpu.pipeline_mode<synchronous>, transform_indices = @transform_2, window_bounds = array<i64: 32, 1>}, {pipeline_mode = #tpu.pipeline_mode<synchronous>, transform_indices = @transform_3, window_bounds = array<i64: 3, 32>}, {pipeline_mode = #tpu.pipeline_mode<synchronous>, transform_indices = @transform_4, window_bounds = array<i64: 3, 1>}, {transform_indices = @transform_5, window_bounds = array<i64: 3, 128>}]} {
    %c0 = arith.constant 0 : index
    %c0_0 = arith.constant 0 : index
    %0 = vector.load %arg2[%c0, %c0_0] : memref<32x3xf32, #tpu.memory_space<vmem>>, vector<32x3xf32>
    %c0_1 = arith.constant 0 : index
    %c0_2 = arith.constant 0 : index
    %1 = vector.load %arg3[%c0_1, %c0_2] : memref<32x1xf32, #tpu.memory_space<vmem>>, vector<32x1xf32>
    %c0_3 = arith.constant 0 : index
    %c0_4 = arith.constant 0 : index
    %2 = vector.load %arg4[%c0_3, %c0_4] : memref<3x32xf32, #tpu.memory_space<vmem>>, vector<3x32xf32>
    %c0_5 = arith.constant 0 : index
    %c0_6 = arith.constant 0 : index
    %3 = vector.load %arg5[%c0_5, %c0_6] : memref<3x1xf32, #tpu.memory_space<vmem>>, vector<3x1xf32>
    %c0_i32 = arith.constant 0 : i32
    %c128_i32 = arith.constant 128 : i32
    %4 = arith.muli %c0_i32, %c128_i32 : i32
    %5 = tpu.assume_multiple %4, 128 : i32
    %c0_7 = arith.constant 0 : index
    %6 = arith.index_cast %5 : i32 to index
    %7 = vector.load %arg1[%c0_7, %6] : memref<3x128xf32, #tpu.memory_space<vmem>>, vector<3x128xf32>
    %cst = arith.constant dense<0.000000e+00> : vector<32x128xf32>
    %8 = tpu.matmul %0, %7, %cst {dimension_numbers = #tpu.dot_dimension_numbers<[1], [0], [0], [1], [0, 0, 1, 1], [], []>} : vector<32x3xf32>, vector<3x128xf32>, vector<32x128xf32> -> vector<32x128xf32>
    %9 = vector.broadcast %1 : vector<32x1xf32> to vector<32x128xf32>
    %10 = arith.addf %8, %9 : vector<32x128xf32>
    %cst_8 = arith.constant 0.000000e+00 : f32
    %11 = vector.broadcast %cst_8 : f32 to vector<32x128xf32>
    %12 = arith.maximumf %10, %11 : vector<32x128xf32>
    %cst_9 = arith.constant dense<0.000000e+00> : vector<3x128xf32>
    %13 = tpu.matmul %2, %12, %cst_9 {dimension_numbers = #tpu.dot_dimension_numbers<[1], [0], [0], [1], [0, 0, 1, 1], [], []>} : vector<3x32xf32>, vector<32x128xf32>, vector<3x128xf32> -> vector<3x128xf32>
    %14 = vector.broadcast %3 : vector<3x1xf32> to vector<3x128xf32>
    %15 = arith.addf %13, %14 : vector<3x128xf32>
    %c0_10 = arith.constant 0 : index
    %16 = arith.index_cast %5 : i32 to index
    %17 = vector.load %arg6[%c0_10, %16] : memref<3x128xf32, #tpu.memory_space<vmem>>, vector<3x128xf32>
    tpu.vector_store %arg6[%c0_10, %16], %15 {strides = array<i32>} : memref<3x128xf32, #tpu.memory_space<vmem>>, vector<3x128xf32>,
    %c1_i32 = arith.constant 1 : i32
    return
  }
  func.func @transform_0(%arg0: i32) -> (i32, i32) {
    %c0_i32 = arith.constant 0 : i32
    %c0_i32_0 = arith.constant 0 : i32
    return %c0_i32, %arg0 : i32, i32
  }
  func.func @transform_1(%arg0: i32) -> (i32, i32) {
    %c0_i32 = arith.constant 0 : i32
    %c0_i32_0 = arith.constant 0 : i32
    %c0_i32_1 = arith.constant 0 : i32
    return %c0_i32, %c0_i32_0 : i32, i32
  }
  func.func @transform_2(%arg0: i32) -> (i32, i32) {
    %c0_i32 = arith.constant 0 : i32
    %c0_i32_0 = arith.constant 0 : i32
    %c0_i32_1 = arith.constant 0 : i32
    return %c0_i32, %c0_i32_0 : i32, i32
  }
  func.func @transform_3(%arg0: i32) -> (i32, i32) {
    %c0_i32 = arith.constant 0 : i32
    %c0_i32_0 = arith.constant 0 : i32
    %c0_i32_1 = arith.constant 0 : i32
    return %c0_i32, %c0_i32_0 : i32, i32
  }
  func.func @transform_4(%arg0: i32) -> (i32, i32) {
    %c0_i32 = arith.constant 0 : i32
    %c0_i32_0 = arith.constant 0 : i32
    %c0_i32_1 = arith.constant 0 : i32
    return %c0_i32, %c0_i32_0 : i32, i32
  }
  func.func @transform_5(%arg0: i32) -> (i32, i32) {
    %c0_i32 = arith.constant 0 : i32
    %c0_i32_0 = arith.constant 0 : i32
    return %c0_i32, %arg0 : i32, i32
  }
}

</mosaic_0001>

<llo_original>
// kernel: tpu_custom_call.1
$region0: #{tpu_custom_call.1}
  #allocation0 [shape = 'u32[]', space=smem, size = 0x4, offset = 0x4, fixed_abs, tag = 'smem constant byte address 0x4 - core index']
  #allocation1 [shape = 'u32[144,128]{1,0:T(1,128)}', space=vmem, size = 0x12000, scoped, tag = 'internal scratch']
  %s0 = inlined_call_operand.vmem [shape: f32[3,128], index: 0, kind: input, shape index: {}]
  %s1 = inlined_call_operand.vmem [shape: f32[32,3], index: 1, kind: input, shape index: {}]
  %s2 = inlined_call_operand.vmem [shape: f32[32,1], index: 2, kind: input, shape index: {}]
  %s3 = inlined_call_operand.vmem [shape: f32[3,32], index: 3, kind: input, shape index: {}]
  %s4 = inlined_call_operand.vmem [shape: f32[3,1], index: 4, kind: input, shape index: {}]
  %s5 = inlined_call_operand.hbm [shape: f32[3,128], index: 5, kind: output, shape index: {}]
  %s6 = sld [smem:[#allocation0]]
  $region30: #{tpu_custom_call.1} parent=0
    _
  %s8 = ssub.s32 1, %s6
  %s9 = scalar_select 0, %s8, %s6
  $region1: #{tpu_custom_call.1} parent=0
    #allocation2 [shape = 'u8[2048]{0}', space=vmem, size = 0x800, scoped, tag = 'output window, operand 0, single buffered']
    #allocation3 [shape = 's32[1]{0}', space=sflag, size = 0x4, scoped, tag = 'scoped memory for tpu_custom_call.1']
    %10 = vsyncpa [#allocation3], 0
    // Predicated region
    $region2: #{tpu_custom_call.1} parent=1 // pred_check
      _
    $region3: #{tpu_custom_call.1} parent=1 // pred_check_branch
      %12 = sbr.rel (0) target = $region5
    $region4: #{tpu_custom_call.1} parent=1 // pred_region
      _
    $region5: #{tpu_custom_call.1} parent=1 // pred_fallthru
      _
    // Predicated region
    $region6: #{tpu_custom_call.1} parent=1 // pred_check
      _
    $region7: #{tpu_custom_call.1} parent=1 // pred_check_branch
      %14 = sbr.rel (0) target = $region9
    $region8: #{tpu_custom_call.1} parent=1 // pred_region
      _
    $region9: #{tpu_custom_call.1} parent=1 // pred_fallthru
      _
    // Predicated region
    $region10: #{tpu_custom_call.1} parent=1 // pred_check
      _
    $region11: #{tpu_custom_call.1} parent=1 // pred_check_branch
      %16 = sbr.rel (0) target = $region13
    $region12: #{tpu_custom_call.1} parent=1 // pred_region
      _
    $region13: #{tpu_custom_call.1} parent=1 // pred_fallthru
      _
    // Predicated region
    $region14: #{tpu_custom_call.1} parent=1 // pred_check
      _
    $region15: #{tpu_custom_call.1} parent=1 // pred_check_branch
      %18 = sbr.rel (0) target = $region17
    $region16: #{tpu_custom_call.1} parent=1 // pred_region
      _
    $region17: #{tpu_custom_call.1} parent=1 // pred_fallthru
      _
    // Predicated region
    $region18: #{tpu_custom_call.1} parent=1 // pred_check
      _
    $region19: #{tpu_custom_call.1} parent=1 // pred_check_branch
      %20 = sbr.rel (0) target = $region21
    $region20: #{tpu_custom_call.1} parent=1 // pred_region
      _
    $region21: #{tpu_custom_call.1} parent=1 // pred_fallthru
      _
    %v21 = vld [vmem:[%s1] sm:$0xff]
    %v22 = vld [vmem:[%s1 + $0x8] sm:$0xff]
    %v23 = vld [vmem:[%s1 + $0x10] sm:$0xff]
    %v24 = vld [vmem:[%s1 + $0x18] sm:$0xff]
    %v25 = vld [vmem:[%s2] sm:$0xff]
    %v26 = vld [vmem:[%s2 + $0x8] sm:$0xff]
    %v27 = vld [vmem:[%s2 + $0x10] sm:$0xff]
    %v28 = vld [vmem:[%s2 + $0x18] sm:$0xff]
    %v29 = vld [vmem:[%s3] sm:$0x7]
    %v30 = vld [vmem:[%s4] sm:$0x7]
    %v31 = vld [vmem:[%s0] sm:$0x7]
    %33 = vset.pattern.permute.xlu0 0
    %34 = vperm.xlu0 %33, %v25
    %v35 = vpop.permute.xlu0 %34
    %38 = vset.pattern.permute.xlu0 0
    %39 = vperm.xlu0 %38, %v26
    %v40 = vpop.permute.xlu0 %39
    %43 = vset.pattern.permute.xlu0 0
    %44 = vperm.xlu0 %43, %v27
    %v45 = vpop.permute.xlu0 %44
    %48 = vset.pattern.permute.xlu0 0
    %49 = vperm.xlu0 %48, %v28
    %v50 = vpop.permute.xlu0 %49
    %vm52 = vcmask 23552
    %v54 = vsel %vm52, %v21, 0
    %v57 = vsel %vm52, %v22, 0
    %v60 = vsel %vm52, %v23, 0
    %v63 = vsel %vm52, %v24, 0
    %vm65 = vcmask 1042432
    %v67 = vsel %vm65, %v31, 0
    %69 = vmatprep.subr.mxu0 0.0
    %70 = vmatpush1.msra.mxu0 %v67
    %71 = vmatprep.subr.mxu0 0.0
    %72 = vmatpush1.msra.mxu0 0.0
    %73 = vmatprep.subr.mxu0 0.0
    %74 = vmatpush1.msra.mxu0 0.0
    %75 = vmatprep.subr.mxu0 0.0
    %76 = vmatpush1.msra.mxu0 0.0
    %77 = vmatprep.subr.mxu0 0.0
    %78 = vmatpush1.msra.mxu0 0.0
    %79 = vmatprep.subr.mxu0 0.0
    %80 = vmatpush1.msra.mxu0 0.0
    %81 = vmatprep.subr.mxu0 0.0
    %82 = vmatpush1.msra.mxu0 0.0
    %83 = vmatprep.subr.mxu0 0.0
    %84 = vmatpush1.msra.mxu0 0.0
    %85 = vmatprep.subr.mxu0 0.0
    %86 = vmatpush1.msra.mxu0 0.0
    %87 = vmatprep.subr.mxu0 0.0
    %88 = vmatpush1.msra.mxu0 0.0
    %89 = vmatprep.subr.mxu0 0.0
    %90 = vmatpush1.msra.mxu0 0.0
    %91 = vmatprep.subr.mxu0 0.0
    %92 = vmatpush1.msra.mxu0 0.0
    %93 = vmatprep.subr.mxu0 0.0
    %94 = vmatpush1.msra.mxu0 0.0
    %95 = vmatprep.subr.mxu0 0.0
    %96 = vmatpush1.msra.mxu0 0.0
    %97 = vmatprep.subr.mxu0 0.0
    %98 = vmatpush1.msra.mxu0 0.0
    %99 = vmatprep.subr.mxu0 0.0
    %100 = vmatpush1.msra.mxu0 0.0
    %101 = vmatprep.subr.mxu0 0.0
    %102 = vmatpush1.msra.mxu0 0.0
    %103 = vmatprep.subr.mxu0 0.0
    %104 = vmatpush1.msra.mxu0 0.0
    %105 = vmatprep.subr.mxu0 0.0
    %106 = vmatpush1.msra.mxu0 0.0
    %107 = vmatprep.subr.mxu0 0.0
    %108 = vmatpush1.msra.mxu0 0.0
    %109 = vmatprep.subr.mxu0 0.0
    %110 = vmatpush1.msra.mxu0 0.0
    %111 = vmatprep.subr.mxu0 0.0
    %112 = vmatpush1.msra.mxu0 0.0
    %113 = vmatprep.subr.mxu0 0.0
    %114 = vmatpush1.msra.mxu0 0.0
    %115 = vmatprep.subr.mxu0 0.0
    %116 = vmatpush1.msra.mxu0 0.0
    %117 = vmatprep.subr.mxu0 0.0
    %118 = vmatpush1.msra.mxu0 0.0
    %119 = vmatprep.subr.mxu0 0.0
    %120 = vmatpush1.msra.mxu0 0.0
    %121 = vmatprep.subr.mxu0 0.0
    %122 = vmatpush1.msra.mxu0 0.0
    %123 = vmatprep.subr.mxu0 0.0
    %124 = vmatpush1.msra.mxu0 0.0
    %125 = vmatprep.subr.mxu0 0.0
    %126 = vmatpush1.msra.mxu0 0.0
    %127 = vmatprep.subr.mxu0 0.0
    %128 = vmatpush1.msra.mxu0 0.0
    %129 = vmatprep.subr.mxu0 0.0
    %130 = vmatpush1.msra.mxu0 0.0
    %131 = vmatprep.subr.mxu0 0.0
    %132 = vmatpush1.msra.mxu0 0.0
    %133 = vmatprep.mubr.f32.mxu0 0.0
    %134 = vmatmul.mubr.f32.gmra.mrb[0].mxu0 %v54
    %v135 = vpop.f32.mrb[0].mxu0
    %v136 = vadd.f32 %v35, %v135
    %v137 = vpop.f32.mrb[0].mxu0
    %138 = vmatprep.mubr.f32.mxu0 0.0
    %139 = vmatmul.mubr.f32.gmra.mrb[0].mxu0 %v57
    %v140 = vpop.f32.mrb[0].mxu0
    %v141 = vadd.f32 %v40, %v140
    %v142 = vpop.f32.mrb[0].mxu0
    %143 = vmatprep.mubr.f32.mxu0 0.0
    %144 = vmatmul.mubr.f32.gmra.mrb[0].mxu0 %v60
    %v145 = vpop.f32.mrb[0].mxu0
    %v146 = vadd.f32 %v45, %v145
    %v147 = vpop.f32.mrb[0].mxu0
    %148 = vmatprep.mubr.f32.mxu0 0.0
    %149 = vmatmul.mubr.f32.gmra.mrb[0].mxu0 %v63
    %v150 = vpop.f32.mrb[0].mxu0
    %v151 = vadd.f32 %v50, %v150
    %v152 = vpop.f32.mrb[0].mxu0
    %153 = vdwg.mxu0
    %v154 = vmax.f32 %v136, 0.0
    %v155 = vmax.f32 %v141, 0.0
    %v156 = vmax.f32 %v146, 0.0
    %v157 = vmax.f32 %v151, 0.0
    %159 = vset.pattern.permute.xlu0 0
    %160 = vperm.xlu0 %159, %v30
    %v161 = vpop.permute.xlu0 %160
    %vm163 = vcmask 261120
    %v165 = vsel %vm163, %v29, 0
    %167 = vmatprep.subr.mxu0 0.0
    %168 = vmatpush1.msra.mxu0 %v154
    %169 = vmatprep.subr.mxu0 0.0
    %170 = vmatpush1.msra.mxu0 %v155
    %171 = vmatprep.subr.mxu0 0.0
    %172 = vmatpush1.msra.mxu0 %v156
    %173 = vmatprep.subr.mxu0 0.0
    %174 = vmatpush1.msra.mxu0 %v157
    %175 = vmatprep.subr.mxu0 0.0
    %176 = vmatpush1.msra.mxu0 0.0
    %177 = vmatprep.subr.mxu0 0.0
    %178 = vmatpush1.msra.mxu0 0.0
    %179 = vmatprep.subr.mxu0 0.0
    %180 = vmatpush1.msra.mxu0 0.0
    %181 = vmatprep.subr.mxu0 0.0
    %182 = vmatpush1.msra.mxu0 0.0
    %183 = vmatprep.subr.mxu0 0.0
    %184 = vmatpush1.msra.mxu0 0.0
    %185 = vmatprep.subr.mxu0 0.0
    %186 = vmatpush1.msra.mxu0 0.0
    %187 = vmatprep.subr.mxu0 0.0
    %188 = vmatpush1.msra.mxu0 0.0
    %189 = vmatprep.subr.mxu0 0.0
    %190 = vmatpush1.msra.mxu0 0.0
    %191 = vmatprep.subr.mxu0 0.0
    %192 = vmatpush1.msra.mxu0 0.0
    %193 = vmatprep.subr.mxu0 0.0
    %194 = vmatpush1.msra.mxu0 0.0
    %195 = vmatprep.subr.mxu0 0.0
    %196 = vmatpush1.msra.mxu0 0.0
    %197 = vmatprep.subr.mxu0 0.0
    %198 = vmatpush1.msra.mxu0 0.0
    %199 = vmatprep.subr.mxu0 0.0
    %200 = vmatpush1.msra.mxu0 0.0
    %201 = vmatprep.subr.mxu0 0.0
    %202 = vmatpush1.msra.mxu0 0.0
    %203 = vmatprep.subr.mxu0 0.0
    %204 = vmatpush1.msra.mxu0 0.0
    %205 = vmatprep.subr.mxu0 0.0
    %206 = vmatpush1.msra.mxu0 0.0
    %207 = vmatprep.subr.mxu0 0.0
    %208 = vmatpush1.msra.mxu0 0.0
    %209 = vmatprep.subr.mxu0 0.0
    %210 = vmatpush1.msra.mxu0 0.0
    %211 = vmatprep.subr.mxu0 0.0
    %212 = vmatpush1.msra.mxu0 0.0
    %213 = vmatprep.subr.mxu0 0.0
    %214 = vmatpush1.msra.mxu0 0.0
    %215 = vmatprep.subr.mxu0 0.0
    %216 = vmatpush1.msra.mxu0 0.0
    %217 = vmatprep.subr.mxu0 0.0
    %218 = vmatpush1.msra.mxu0 0.0
    %219 = vmatprep.subr.mxu0 0.0
    %220 = vmatpush1.msra.mxu0 0.0
    %221 = vmatprep.subr.mxu0 0.0
    %222 = vmatpush1.msra.mxu0 0.0
    %223 = vmatprep.subr.mxu0 0.0
    %224 = vmatpush1.msra.mxu0 0.0
    %225 = vmatprep.subr.mxu0 0.0
    %226 = vmatpush1.msra.mxu0 0.0
    %227 = vmatprep.subr.mxu0 0.0
    %228 = vmatpush1.msra.mxu0 0.0
    %229 = vmatprep.subr.mxu0 0.0
    %230 = vmatpush1.msra.mxu0 0.0
    %231 = vmatprep.mubr.f32.mxu0 0.0
    %232 = vmatmul.mubr.f32.gmra.mrb[0].mxu0 %v165
    %v233 = vpop.f32.mrb[0].mxu0
    %v234 = vadd.f32 %v161, %v233
    %v235 = vpop.f32.mrb[0].mxu0
    %236 = vdwg.mxu0
    %237 = vst [vmem:[#allocation2] sm:$0x7] %v234
    // Predicated region
    $region22: #{tpu_custom_call.1} parent=1 // pred_check
      _
    $region23: #{tpu_custom_call.1} parent=1 // pred_check_branch
      %239 = sbr.rel (0) target = $region25
    $region24: #{tpu_custom_call.1} parent=1 // pred_region
      %s241 = ssub.s32 64, 64
      %242 = vsyncadd [#allocation3], %s241
      %s244 = sshll.u32 [#allocation2], 4
      %s245 = int_to_ptr.vmem [resolvable:$true] %s244
      %247 = dma.vmem_to_hbm [thread:$0]  %s245, 64, %s5, [#allocation3]
    $region25: #{tpu_custom_call.1} parent=1 // pred_fallthru
      _
    // Predicated region
    $region26: #{tpu_custom_call.1} parent=1 // pred_check
      _
    $region27: #{tpu_custom_call.1} parent=1 // pred_check_branch
      %249 = sbr.rel (0) target = $region29
    $region28: #{tpu_custom_call.1} parent=1 // pred_region
      %250 = dma.done [#allocation3], 64
    $region29: #{tpu_custom_call.1} parent=1 // pred_fallthru
      _
    %251 = vsyncpa [#allocation3], 1

</llo_original>
